<compile_context>
chip_gen: v5e
topology: v5e:2x2
jax: 0.10.0
libtpu: 0.0.40
codegen_flags: <defaults>
</compile_context>

<pallas_src>
import functools

import jax
import jax.numpy as jnp
from jax import lax
from jax.experimental import pallas as pl
from jax.experimental.pallas import tpu as pltpu


def _vq_kernel(z_ref, e_ref, et_ref, e2h_ref, zq_ref, idx_ref, sse_ref, *,
               tile_hw, hw_valid, needs_mask):
    """One (batch, spatial-tile) grid cell against the full codebook.

    z_ref  : (1, C, TN)    input tile, channels x spatial positions
    e_ref  : (K, C)        embedding table (resident every grid step)
    et_ref : (C, K)        pre-transposed embedding table (resident)
    e2h_ref: (K, 1)        0.5 * ||e_k||^2, precomputed (resident)
    zq_ref : (1, C, TN)    quantized output tile
    idx_ref: (1, 1, TN)    argmin codebook indices (int32), lane-dense
    sse_ref: (1, 1, 1, 1)  per-tile partial sum of squared error
    """
    z = z_ref[0].astype(jnp.float32)                  # (C, TN)
    e = e_ref[...].astype(jnp.float32)                # (K, C)
    et = et_ref[...].astype(jnp.float32)              # (C, K)
    e2h = e2h_ref[...]                                # (K, 1)
    K = e.shape[0]

    # score s[k, n] = e_k . z_n - 0.5*||e_k||^2  ->  argmax_k s == argmin_k d
    # (the per-column ||z_n||^2 offset and the factor 2 do not change argmin)
    # TODO(synk): for large C (e.g. VQGAN dim=256) cast e/z to bf16 here for
    # the MXU; with C=4 the matmul is negligible and f32 keeps exact parity.
    s = jnp.dot(e, z, preferred_element_type=jnp.float32) - e2h      # (K, TN)

    # argmax over the codebook axis with first-occurrence tie-break
    # (== torch.argmin over the distances).
    s_max = jnp.max(s, axis=0, keepdims=True)                        # (1, TN)
    iota_k = lax.broadcasted_iota(jnp.int32, (K, 1), 0)              # (K, 1)
    masked = jnp.where(s == s_max, iota_k, K)                        # (K, TN)
    idx = jnp.min(masked, axis=0, keepdims=True)                     # (1, TN)

    # gather z_q[:, n] = e[idx[n], :] via one-hot matmul (MXU-friendly),
    # reusing the masked iota for the one-hot (no second full iota slab).
    # TODO(synk): for very large codebooks (K ~ 16k) add an innermost
    # "arbitrary" K-chunk grid axis carrying a running (max, argmax, z_q)
    # so live (K_chunk, TN) slabs fit v7x's 64 MiB VMEM.
    onehot = (masked == idx).astype(jnp.float32)                     # (K, TN)
    zq = jnp.dot(et, onehot, preferred_element_type=jnp.float32)     # (C, TN)

    zq_ref[0] = zq.astype(zq_ref.dtype)
    idx_ref[0] = idx

    # exact per-position SSE from the selected code (no cancellation issues);
    # (C, TN) with C=4 is essentially free.
    diff = zq - z
    per_col = jnp.sum(diff * diff, axis=0, keepdims=True)            # (1, TN)
    if needs_mask:
        col = (pl.program_id(1) * tile_hw
               + lax.broadcasted_iota(jnp.int32, per_col.shape, 1))
        per_col = jnp.where(col < hw_valid, per_col, 0.0)
    tile_sse = jnp.sum(per_col)
    sse_ref[...] = tile_sse + jnp.zeros_like(sse_ref)


def _round_up(x, m):
    return ((x + m - 1) // m) * m


def _pick_max_tile(K):
    """Largest lane-dense spatial tile such that ~3 live (K, TN) f32 slabs
    stay around 6 MiB (safe under every generation's default scoped VMEM,
    including v7x)."""
    budget_bytes = 6 * 1024 * 1024
    tn = budget_bytes // (3 * 4 * max(K, 1))
    tn = (tn // 128) * 128
    return int(min(max(tn, 128), 4096))


@functools.partial(jax.jit, static_argnames=("beta",))
def vector_quantizer_forward(z, embedding, *, beta):
    """Forward of VectorQuantizer.

    z         : (B, C, H, W) float32 (NCHW, like the PyTorch module)
    embedding : (n_embed, dim) float32 codebook, dim == C
    returns   : (z_q [B,C,H,W], loss scalar, indices [B*H*W] int32)
    """
    B, C, H, W = z.shape
    K, D = embedding.shape
    assert D == C

    HW = H * W
    max_tile = _pick_max_tile(K)
    tile_hw = min(max_tile, _round_up(HW, 128))
    HW_pad = _round_up(HW, tile_hw)
    num_t = HW_pad // tile_hw
    needs_mask = HW_pad != HW

    z3 = z.reshape(B, C, HW)            # free reshape: NCHW stays NCHW
    if needs_mask:
        z3 = jnp.pad(z3, ((0, 0), (0, 0), (0, HW_pad - HW)))

    # one-time codebook preprocessing (tiny, hoisted out of the grid loop)
    emb_f32 = embedding.astype(jnp.float32)
    e_t = emb_f32.T                                                   # (D, K)
    e2h = 0.5 * jnp.sum(emb_f32 * emb_f32, axis=1, keepdims=True)     # (K, 1)

    kernel = functools.partial(_vq_kernel, tile_hw=tile_hw, hw_valid=HW,
                               needs_mask=needs_mask)

    zq3, idx3, sse_parts = pl.pallas_call(
        kernel,
        out_shape=(
            jax.ShapeDtypeStruct((B, C, HW_pad), z.dtype),
            jax.ShapeDtypeStruct((B, 1, HW_pad), jnp.int32),
            jax.ShapeDtypeStruct((B, num_t, 1, 1), jnp.float32),
        ),
        grid_spec=pltpu.PrefetchScalarGridSpec(
            num_scalar_prefetch=0,
            grid=(B, num_t),
            in_specs=[
                pl.BlockSpec((1, C, tile_hw), lambda b, t: (b, 0, t)),  # z tile
                pl.BlockSpec((K, D), lambda b, t: (0, 0)),    # codebook
                pl.BlockSpec((D, K), lambda b, t: (0, 0)),    # codebook^T
                pl.BlockSpec((K, 1), lambda b, t: (0, 0)),    # 0.5*||e||^2
            ],
            out_specs=[
                pl.BlockSpec((1, C, tile_hw), lambda b, t: (b, 0, t)),  # z_q
                pl.BlockSpec((1, 1, tile_hw), lambda b, t: (b, 0, t)),  # indices
                pl.BlockSpec((1, 1, 1, 1), lambda b, t: (b, t, 0, 0)),  # sse part
            ],
        ),
        compiler_params=pltpu.CompilerParams(
            # every grid cell is independent -> both axes shard across
            # TensorCores on v7x (measured-neutral on single-TC v5e/v6e).
            dimension_semantics=("parallel", "parallel"),
        ),
    )(z3, embedding, e_t, e2h)

    # loss = beta * mean((sg(z_q) - z)^2) + mean((z_q - sg(z))^2)
    # (forward value: both terms are the same MSE)
    mse = jnp.sum(sse_parts) / jnp.float32(B * HW * C)
    loss = (1.0 + beta) * mse

    # straight-through: z_q = z + sg(z_q - z) -> forward value is z_q.
    # TODO(synk): forward-only; training needs a custom_vjp reproducing the
    # stop-gradient split (pl.pallas_call is not differentiable here).
    if needs_mask:
        zq3 = zq3[:, :, :HW]
        idx3 = idx3[:, :, :HW]
    z_q = zq3.reshape(B, C, H, W)
    # TODO(synk): torch returns int64 (LongTensor) indices; TPU kernel emits int32.
    indices = idx3.reshape(-1)          # (b, h, w)-major, same as torch
    return z_q, loss, indices


def _reference_forward(z, embedding, beta):
    """Pure-JAX reference mirroring the torch module (high-precision dots)."""
    B, C, H, W = z.shape
    z_nhwc = jnp.transpose(z, (0, 2, 3, 1))
    zf = z_nhwc.reshape(-1, C)
    d = (jnp.sum(zf**2, axis=1, keepdims=True)
         + jnp.sum(embedding**2, axis=1)
         - 2.0 * jnp.dot(zf, embedding.T, precision=jax.lax.Precision.HIGHEST))
    idx = jnp.argmin(d, axis=1)
    zq = embedding[idx].reshape(z_nhwc.shape)
    mse = jnp.mean((zq - z_nhwc) ** 2)
    loss = beta * mse + mse
    zq = jnp.transpose(zq, (0, 3, 1, 2))
    return zq, loss, idx.astype(jnp.int32), d


if __name__ == "__main__":
    # Module hyper-params (dim == channels of z)
    dim = 4
    n_embed = 128
    beta = 0.25

    # Small input consistent with the module: z is (B, C, H, W)
    B, C, H, W = 2, dim, 16, 16

    key = jax.random.PRNGKey(0)
    k_z, k_e = jax.random.split(key)
    z = jax.random.normal(k_z, (B, C, H, W), dtype=jnp.float32)
    # nn.Embedding(n_embed, dim).weight.uniform_(-1/n_embed, 1/n_embed)
    embedding = jax.random.uniform(
        k_e, (n_embed, dim), dtype=jnp.float32,
        minval=-1.0 / n_embed, maxval=1.0 / n_embed)

    z_q, loss, indices = vector_quantizer_forward(z, embedding, beta=beta)
    jax.block_until_ready((z_q, loss, indices))

    # --- sanity checks against the pure-JAX reference ----------------------
    zq_ref, loss_ref, idx_ref, d_ref = _reference_forward(z, embedding, beta)
    N = B * H * W
    assert z_q.shape == (B, C, H, W)
    assert indices.shape == (N,)

    # (1) kernel indices are a valid argmin of the reference distances
    #     (tolerant to fp tie-breaks between numerically near-equal codes)
    chosen = d_ref[jnp.arange(N), indices]
    assert float(jnp.max(chosen - jnp.min(d_ref, axis=1))) <= 1e-3

    # (2) z_q matches the codebook rows selected by the kernel's indices
    zq_from_idx = embedding[indices].reshape(B, H, W, C).transpose(0, 3, 1, 2)
    assert jnp.allclose(z_q, zq_from_idx, atol=1e-4)

    # (3) loss matches the reference value
    assert jnp.allclose(loss, loss_ref, rtol=1e-3, atol=1e-6)

    print("KERNEL_OK")
</pallas_src>

<mosaic_0001>
module attributes {stable_mosaic.version = 11 : i64} {
  func.func @_vq_kernel(%arg0: i32, %arg1: i32, %arg2: memref<1x4x256xf32, #tpu.memory_space<vmem>>, %arg3: memref<128x4xf32, #tpu.memory_space<vmem>>, %arg4: memref<4x128xf32, #tpu.memory_space<vmem>>, %arg5: memref<128x1xf32, #tpu.memory_space<vmem>>, %arg6: memref<1x4x256xf32, #tpu.memory_space<vmem>>, %arg7: memref<1x1x256xi32, #tpu.memory_space<vmem>>, %arg8: memref<1x1x1x1xf32, #tpu.memory_space<vmem>>) attributes {dimension_semantics = [#tpu.dimension_semantics<parallel>, #tpu.dimension_semantics<parallel>], iteration_bounds = array<i64: 2, 1>, scalar_prefetch = 0 : i64, scratch_operands = 0 : i64, tpu.core_type = #tpu.core_type<tc>, window_params = [{transform_indices = @transform_0, window_bounds = array<i64: 1, 4, 256>}, {pipeline_mode = #tpu.pipeline_mode<synchronous>, transform_indices = @transform_1, window_bounds = array<i64: 128, 4>}, {pipeline_mode = #tpu.pipeline_mode<synchronous>, transform_indices = @transform_2, window_bounds = array<i64: 4, 128>}, {pipeline_mode = #tpu.pipeline_mode<synchronous>, transform_indices = @transform_3, window_bounds = array<i64: 128, 1>}, {transform_indices = @transform_4, window_bounds = array<i64: 1, 4, 256>}, {transform_indices = @transform_5, window_bounds = array<i64: 1, 1, 256>}, {transform_indices = @transform_6, window_bounds = array<i64: 1, 1, 1, 1>}]} {
    %c0 = arith.constant 0 : index
    %c0_0 = arith.constant 0 : index
    %c0_1 = arith.constant 0 : index
    %0 = vector.load %arg2[%c0, %c0_0, %c0_1] : memref<1x4x256xf32, #tpu.memory_space<vmem>>, vector<1x4x256xf32>
    %1 = vector.shape_cast %0 : vector<1x4x256xf32> to vector<4x256xf32>
    %c0_2 = arith.constant 0 : index
    %c0_3 = arith.constant 0 : index
    %2 = vector.load %arg3[%c0_2, %c0_3] : memref<128x4xf32, #tpu.memory_space<vmem>>, vector<128x4xf32>
    %c0_4 = arith.constant 0 : index
    %c0_5 = arith.constant 0 : index
    %3 = vector.load %arg4[%c0_4, %c0_5] : memref<4x128xf32, #tpu.memory_space<vmem>>, vector<4x128xf32>
    %c0_6 = arith.constant 0 : index
    %c0_7 = arith.constant 0 : index
    %4 = vector.load %arg5[%c0_6, %c0_7] : memref<128x1xf32, #tpu.memory_space<vmem>>, vector<128x1xf32>
    %cst = arith.constant dense<0.000000e+00> : vector<128x256xf32>
    %5 = tpu.matmul %2, %1, %cst {dimension_numbers = #tpu.dot_dimension_numbers<[1], [0], [0], [1], [0, 0, 1, 1], [], []>} : vector<128x4xf32>, vector<4x256xf32>, vector<128x256xf32> -> vector<128x256xf32>
    %6 = vector.broadcast %4 : vector<128x1xf32> to vector<128x256xf32>
    %7 = arith.subf %5, %6 : vector<128x256xf32>
    %cst_8 = arith.constant dense<0xFF800000> : vector<256xf32>
    %8 = vector.multi_reduction <maximumf>, %7, %cst_8 [0] : vector<128x256xf32> to vector<256xf32>
    %9 = vector.shape_cast %8 : vector<256xf32> to vector<1x256xf32>
    %10 = tpu.iota {dimensions = array<i32: 0>} : vector<128x1xi32>
    %11 = vector.broadcast %9 : vector<1x256xf32> to vector<128x256xf32>
    %12 = arith.cmpf oeq, %7, %11 : vector<128x256xf32>
    %c128_i32 = arith.constant 128 : i32
    %13 = vector.shape_cast %10 : vector<128x1xi32> to vector<128x1xi32>
    %14 = vector.broadcast %13 : vector<128x1xi32> to vector<128x256xi32>
    %15 = vector.broadcast %c128_i32 : i32 to vector<128x256xi32>
    %16 = arith.select %12, %14, %15 : vector<128x256xi1>, vector<128x256xi32>
    %cst_9 = arith.constant dense<2147483647> : vector<256xi32>
    %17 = vector.multi_reduction <minsi>, %16, %cst_9 [0] : vector<128x256xi32> to vector<256xi32>
    %18 = vector.shape_cast %17 : vector<256xi32> to vector<1x256xi32>
    %19 = vector.broadcast %18 : vector<1x256xi32> to vector<128x256xi32>
    %20 = arith.cmpi eq, %16, %19 : vector<128x256xi32>
    %21 = arith.extui %20 : vector<128x256xi1> to vector<128x256xi32>
    %22 = arith.sitofp %21 : vector<128x256xi32> to vector<128x256xf32>
    %cst_10 = arith.constant dense<0.000000e+00> : vector<4x256xf32>
    %23 = tpu.matmul %3, %22, %cst_10 {dimension_numbers = #tpu.dot_dimension_numbers<[1], [0], [0], [1], [0, 0, 1, 1], [], []>} : vector<4x128xf32>, vector<128x256xf32>, vector<4x256xf32> -> vector<4x256xf32>
    %c0_11 = arith.constant 0 : index
    %c0_12 = arith.constant 0 : index
    %c0_13 = arith.constant 0 : index
    %24 = vector.load %arg6[%c0_11, %c0_12, %c0_13] : memref<1x4x256xf32, #tpu.memory_space<vmem>>, vector<1x4x256xf32>
    %25 = vector.shape_cast %24 : vector<1x4x256xf32> to vector<4x256xf32>
    %26 = vector.shape_cast %23 : vector<4x256xf32> to vector<1x4x256xf32>
    tpu.vector_store %arg6[%c0_11, %c0_12, %c0_13], %26 {strides = array<i32>} : memref<1x4x256xf32, #tpu.memory_space<vmem>>, vector<1x4x256xf32>,
    %c0_14 = arith.constant 0 : index
    %c0_15 = arith.constant 0 : index
    %c0_16 = arith.constant 0 : index
    %27 = vector.load %arg7[%c0_14, %c0_15, %c0_16] : memref<1x1x256xi32, #tpu.memory_space<vmem>>, vector<1x1x256xi32>
    %28 = vector.shape_cast %27 : vector<1x1x256xi32> to vector<1x256xi32>
    %29 = vector.shape_cast %18 : vector<1x256xi32> to vector<1x1x256xi32>
    tpu.vector_store %arg7[%c0_14, %c0_15, %c0_16], %29 {strides = array<i32>} : memref<1x1x256xi32, #tpu.memory_space<vmem>>, vector<1x1x256xi32>,
    %30 = arith.subf %23, %1 : vector<4x256xf32>
    %31 = arith.mulf %30, %30 : vector<4x256xf32>
    %cst_17 = arith.constant dense<0.000000e+00> : vector<256xf32>
    %32 = vector.multi_reduction <add>, %31, %cst_17 [0] : vector<4x256xf32> to vector<256xf32>
    %33 = vector.shape_cast %32 : vector<256xf32> to vector<1x256xf32>
    %34 = vector.shape_cast %33 : vector<1x256xf32> to vector<1x1x256xf32>
    %cst_18 = arith.constant dense<0.000000e+00> : vector<1xf32>
    %35 = vector.multi_reduction <add>, %34, %cst_18 [1, 2] : vector<1x1x256xf32> to vector<1xf32>
    %36 = vector.shape_cast %35 : vector<1xf32> to vector<1x1x1xf32>
    %37 = vector.extract %36[0, 0, 0] : f32 from vector<1x1x1xf32>
    %cst_19 = arith.constant 0.000000e+00 : f32
    %38 = vector.broadcast %cst_19 : f32 to vector<1x1x1x1xf32>
    %39 = vector.broadcast %37 : f32 to vector<1x1x1x1xf32>
    %40 = arith.addf %39, %38 : vector<1x1x1x1xf32>
    %c0_20 = arith.constant 0 : index
    %c0_21 = arith.constant 0 : index
    %c0_22 = arith.constant 0 : index
    %c0_23 = arith.constant 0 : index
    %41 = vector.load %arg8[%c0_20, %c0_21, %c0_22, %c0_23] : memref<1x1x1x1xf32, #tpu.memory_space<vmem>>, vector<1x1x1x1xf32>
    tpu.vector_store %arg8[%c0_20, %c0_21, %c0_22, %c0_23], %40 {strides = array<i32>} : memref<1x1x1x1xf32, #tpu.memory_space<vmem>>, vector<1x1x1x1xf32>,
    return
  }
  func.func @transform_0(%arg0: i32, %arg1: i32) -> (i32, i32, i32) {
    %c0_i32 = arith.constant 0 : i32
    %c0_i32_0 = arith.constant 0 : i32
    return %arg0, %c0_i32, %arg1 : i32, i32, i32
  }
  func.func @transform_1(%arg0: i32, %arg1: i32) -> (i32, i32) {
    %c0_i32 = arith.constant 0 : i32
    %c0_i32_0 = arith.constant 0 : i32
    %c0_i32_1 = arith.constant 0 : i32
    return %c0_i32, %c0_i32_0 : i32, i32
  }
  func.func @transform_2(%arg0: i32, %arg1: i32) -> (i32, i32) {
    %c0_i32 = arith.constant 0 : i32
    %c0_i32_0 = arith.constant 0 : i32
    %c0_i32_1 = arith.constant 0 : i32
    return %c0_i32, %c0_i32_0 : i32, i32
  }
  func.func @transform_3(%arg0: i32, %arg1: i32) -> (i32, i32) {
    %c0_i32 = arith.constant 0 : i32
    %c0_i32_0 = arith.constant 0 : i32
    %c0_i32_1 = arith.constant 0 : i32
    return %c0_i32, %c0_i32_0 : i32, i32
  }
  func.func @transform_4(%arg0: i32, %arg1: i32) -> (i32, i32, i32) {
    %c0_i32 = arith.constant 0 : i32
    %c0_i32_0 = arith.constant 0 : i32
    return %arg0, %c0_i32, %arg1 : i32, i32, i32
  }
  func.func @transform_5(%arg0: i32, %arg1: i32) -> (i32, i32, i32) {
    %c0_i32 = arith.constant 0 : i32
    %c0_i32_0 = arith.constant 0 : i32
    return %arg0, %c0_i32, %arg1 : i32, i32, i32
  }
  func.func @transform_6(%arg0: i32, %arg1: i32) -> (i32, i32, i32, i32) {
    %c0_i32 = arith.constant 0 : i32
    %c0_i32_0 = arith.constant 0 : i32
    %c0_i32_1 = arith.constant 0 : i32
    return %arg0, %arg1, %c0_i32, %c0_i32_0 : i32, i32, i32, i32
  }
}

</mosaic_0001>

<llo_original>
// kernel: vector_quantizer_forward.1
$region0: #{vector_quantizer_forward.1}
  #allocation0 [shape = 'u32[]', space=smem, size = 0x4, offset = 0x4, fixed_abs, tag = 'smem constant byte address 0x4 - core index']
  #allocation1 [shape = 'u32[72,128]{1,0:T(1,128)}', space=vmem, size = 0x9000, scoped, tag = 'internal scratch']
  %s0 = inlined_call_operand.vmem [shape: f32[2,4,256], index: 0, kind: input, shape index: {}]
  %s1 = inlined_call_operand.vmem [shape: f32[128,4], index: 1, kind: input, shape index: {}]
  %s2 = inlined_call_operand.vmem [shape: f32[4,128], index: 2, kind: input, shape index: {}]
  %s3 = inlined_call_operand.vmem [shape: f32[128,1], index: 3, kind: input, shape index: {}]
  %s4 = inlined_call_operand.vmem [shape: f32[2,4,256], index: 4, kind: output, shape index: {0}]
  %s5 = inlined_call_operand.hbm [shape: s32[2,1,256], index: 5, kind: output, shape index: {1}]
  %s6 = inlined_call_operand.vmem [shape: f32[2,1,1,1], index: 6, kind: output, shape index: {2}]
  %7 = xla_tuple %s4, %s5, %s6
  %s8 = sld [smem:[#allocation0]]
  $region65: #{vector_quantizer_forward.1} parent=0
    _
  %s10 = ssub.s32 1, %s8
  %s11 = scalar_select 0, %s10, %s8
  $region1: #{vector_quantizer_forward.1} parent=0
    #allocation2 [shape = 'u8[2048]{0}', space=vmem, size = 0x800, scoped, tag = 'output window, operand 1']
    #allocation3 [shape = 's32[2]{0}', space=sflag, size = 0x8, scoped, tag = 'scoped memory for vector_quantizer_forward.1']
    %12 = vsyncpa [#allocation3], 0
    %s13 = scalar_lea.sflag [#allocation3], 1
    %14 = vsyncpa %s13, 0
    loop: start=0, step=1, limit=4
    $region2: #{vector_quantizer_forward.1} parent=1 // loop_pre_header
      _
    $region3: #{vector_quantizer_forward.1} parent=1 // loop_header
      %s16 = sphi 0, %s20
      %p17 = scmp.ge.s32.totalorder %s16, 4
      %s23 = sphi 0, %s35
      %s24 = sphi 0, %s31
      %s25 = sphi 0, %s23
      %s26 = sphi 0, %s24
      %s27 = sphi 0, %s25
      %s28 = sphi 0, %s26
      %s40 = sphi 0, %s42
      %s43 = sphi 0, %s40
      %s44 = sphi 0, %s43
      %s60 = sphi 0, %s44
      %s64 = sphi 0, %s64
      %s66 = sphi 0, %s64
      %s67 = sphi 0, %s66
      %s81 = sphi 0, %s67
      %s85 = sphi 0, %s85
      %s87 = sphi 0, %s85
      %s88 = sphi 0, %s87
      %s102 = sphi 0, %s88
      %s106 = sphi 0, %s106
      %s108 = sphi 0, %s106
      %s109 = sphi 0, %s108
      %s123 = sphi 0, %s109
      %s131 = sphi 0, %s133
      %s134 = sphi 0, %s131
      %s135 = sphi 0, %s134
      %s151 = sphi 0, %s135
      %s159 = sphi 0, %s161
      %s162 = sphi 0, %s159
      %s163 = sphi 0, %s162
      %s179 = sphi 0, %s163
      %s187 = sphi 0, %s189
      %s190 = sphi 0, %s187
      %s191 = sphi 0, %s190
      %s207 = sphi 0, %s191
    $region4: #{vector_quantizer_forward.1} parent=1 // loop_header_branch
      %19 = sbr.rel (%p17) target = $region8
    $region5: #{vector_quantizer_forward.1} parent=1 // loop_body
      %s21 = ssub.s32 %s16, 1
      %s22 = ssub.s32 %s16, 2
      %s29 = sadd.s32 1, %s24
      %p30 = scmp.ge.s32.totalorder %s29, 1
      %s31 = scalar_select %p30, 0, %s29
      %s32 = sadd.s32 1, %s23
      %s33 = scalar_select %p30, %s32, %s23
      %p34 = scmp.ge.s32.totalorder %s33, 2
      %s35 = scalar_select %p34, 0, %s33
      %s36 = ssub.s32 %s23, %s35
      %s37 = ssub.s32 %s24, %s31
      %s38 = sor.u32 %s36, %s37
      %p39 = scmp.eq.s32.totalorder %s38, 0
      %s41 = sadd.s32 %s40, 1
      %s42 = scalar_select %p39, %s40, %s41
      %p45 = pneg %p39
      %p46 = scmp.eq.s32.totalorder %s16, 1
      %p47 = por %p45, %p46
      %p48 = scmp.ne.s32.totalorder %s40, %s43
      %p49 = scmp.eq.s32.totalorder %s16, 0
      %p50 = por %p48, %p49
      %p51 = scmp.ne.s32.totalorder %s40, %s43
      %p52 = scmp.eq.s32.totalorder %s21, 1
      %p53 = por %p51, %p52
      %p54 = scmp.ne.s32.totalorder %s43, %s44
      %p55 = scmp.eq.s32.totalorder %s21, 0
      %p56 = por %p54, %p55
      %p57 = scmp.ne.s32.totalorder %s43, %s44
      %p58 = scmp.eq.s32.totalorder %s22, 1
      %p59 = por %p57, %p58
      %p61 = scmp.ne.s32.totalorder %s44, %s60
      %p62 = scmp.eq.s32.totalorder %s22, 0
      %p63 = por %p61, %p62
      %s65 = sadd.s32 %s64, 1
      %p68 = scmp.eq.s32.totalorder %s16, 1
      %p69 = scmp.ne.s32.totalorder %s64, %s66
      %p70 = scmp.eq.s32.totalorder %s16, 0
      %p71 = por %p69, %p70
      %p72 = scmp.ne.s32.totalorder %s64, %s66
      %p73 = scmp.eq.s32.totalorder %s21, 1
      %p74 = por %p72, %p73
      %p75 = scmp.ne.s32.totalorder %s66, %s67
      %p76 = scmp.eq.s32.totalorder %s21, 0
      %p77 = por %p75, %p76
      %p78 = scmp.ne.s32.totalorder %s66, %s67
      %p79 = scmp.eq.s32.totalorder %s22, 1
      %p80 = por %p78, %p79
      %p82 = scmp.ne.s32.totalorder %s67, %s81
      %p83 = scmp.eq.s32.totalorder %s22, 0
      %p84 = por %p82, %p83
      %s86 = sadd.s32 %s85, 1
      %p89 = scmp.eq.s32.totalorder %s16, 1
      %p90 = scmp.ne.s32.totalorder %s85, %s87
      %p91 = scmp.eq.s32.totalorder %s16, 0
      %p92 = por %p90, %p91
      %p93 = scmp.ne.s32.totalorder %s85, %s87
      %p94 = scmp.eq.s32.totalorder %s21, 1
      %p95 = por %p93, %p94
      %p96 = scmp.ne.s32.totalorder %s87, %s88
      %p97 = scmp.eq.s32.totalorder %s21, 0
      %p98 = por %p96, %p97
      %p99 = scmp.ne.s32.totalorder %s87, %s88
      %p100 = scmp.eq.s32.totalorder %s22, 1
      %p101 = por %p99, %p100
      %p103 = scmp.ne.s32.totalorder %s88, %s102
      %p104 = scmp.eq.s32.totalorder %s22, 0
      %p105 = por %p103, %p104
      %s107 = sadd.s32 %s106, 1
      %p110 = scmp.eq.s32.totalorder %s16, 1
      %p111 = scmp.ne.s32.totalorder %s106, %s108
      %p112 = scmp.eq.s32.totalorder %s16, 0
      %p113 = por %p111, %p112
      %p114 = scmp.ne.s32.totalorder %s106, %s108
      %p115 = scmp.eq.s32.totalorder %s21, 1
      %p116 = por %p114, %p115
      %p117 = scmp.ne.s32.totalorder %s108, %s109
      %p118 = scmp.eq.s32.totalorder %s21, 0
      %p119 = por %p117, %p118
      %p120 = scmp.ne.s32.totalorder %s108, %s109
      %p121 = scmp.eq.s32.totalorder %s22, 1
      %p122 = por %p120, %p121
      %p124 = scmp.ne.s32.totalorder %s109, %s123
      %p125 = scmp.eq.s32.totalorder %s22, 0
      %p126 = por %p124, %p125
      %s127 = ssub.s32 %s23, %s35
      %s128 = ssub.s32 %s24, %s31
      %s129 = sor.u32 %s127, %s128
      %p130 = scmp.eq.s32.totalorder %s129, 0
      %s132 = sadd.s32 %s131, 1
      %s133 = scalar_select %p130, %s131, %s132
      %p136 = pneg %p130
      %p137 = scmp.eq.s32.totalorder %s16, 1
      %p138 = por %p136, %p137
      %p139 = scmp.ne.s32.totalorder %s131, %s134
      %p140 = scmp.eq.s32.totalorder %s16, 0
      %p141 = por %p139, %p140
      %p142 = scmp.ne.s32.totalorder %s131, %s134
      %p143 = scmp.eq.s32.totalorder %s21, 1
      %p144 = por %p142, %p143
      %p145 = scmp.ne.s32.totalorder %s134, %s135
      %p146 = scmp.eq.s32.totalorder %s21, 0
      %p147 = por %p145, %p146
      %p148 = scmp.ne.s32.totalorder %s134, %s135
      %p149 = scmp.eq.s32.totalorder %s22, 1
      %p150 = por %p148, %p149
      %p152 = scmp.ne.s32.totalorder %s135, %s151
      %p153 = scmp.eq.s32.totalorder %s22, 0
      %p154 = por %p152, %p153
      %s155 = ssub.s32 %s23, %s35
      %s156 = ssub.s32 %s24, %s31
      %s157 = sor.u32 %s155, %s156
      %p158 = scmp.eq.s32.totalorder %s157, 0
      %s160 = sadd.s32 %s159, 1
      %s161 = scalar_select %p158, %s159, %s160
      %p164 = pneg %p158
      %p165 = scmp.eq.s32.totalorder %s16, 1
      %p166 = por %p164, %p165
      %p167 = scmp.ne.s32.totalorder %s159, %s162
      %p168 = scmp.eq.s32.totalorder %s16, 0
      %p169 = por %p167, %p168
      %p170 = scmp.ne.s32.totalorder %s159, %s162
      %p171 = scmp.eq.s32.totalorder %s21, 1
      %p172 = por %p170, %p171
      %p173 = scmp.ne.s32.totalorder %s162, %s163
      %p174 = scmp.eq.s32.totalorder %s21, 0
      %p175 = por %p173, %p174
      %p176 = scmp.ne.s32.totalorder %s162, %s163
      %p177 = scmp.eq.s32.totalorder %s22, 1
      %p178 = por %p176, %p177
      %p180 = scmp.ne.s32.totalorder %s163, %s179
      %p181 = scmp.eq.s32.totalorder %s22, 0
      %p182 = por %p180, %p181
      %s183 = ssub.s32 %s23, %s35
      %s184 = ssub.s32 %s24, %s31
      %s185 = sor.u32 %s183, %s184
      %p186 = scmp.eq.s32.totalorder %s185, 0
      %s188 = sadd.s32 %s187, 1
      %s189 = scalar_select %p186, %s187, %s188
      %p192 = pneg %p186
      %p193 = scmp.eq.s32.totalorder %s16, 1
      %p194 = por %p192, %p193
      %p195 = scmp.ne.s32.totalorder %s187, %s190
      %p196 = scmp.eq.s32.totalorder %s16, 0
      %p197 = por %p195, %p196
      %p198 = scmp.ne.s32.totalorder %s187, %s190
      %p199 = scmp.eq.s32.totalorder %s21, 1
      %p200 = por %p198, %p199
      %p201 = scmp.ne.s32.totalorder %s190, %s191
      %p202 = scmp.eq.s32.totalorder %s21, 0
      %p203 = por %p201, %p202
      %p204 = scmp.ne.s32.totalorder %s190, %s191
      %p205 = scmp.eq.s32.totalorder %s22, 1
      %p206 = por %p204, %p205
      %p208 = scmp.ne.s32.totalorder %s191, %s207
      %p209 = scmp.eq.s32.totalorder %s22, 0
      %p210 = por %p208, %p209
      %p211 = scmp.le.s32.totalorder 1, %s16
      %p212 = scmp.lt.s32.totalorder %s16, 3
      %p213 = pnand %p211, %p212
      %p214 = pneg %p213
      // Predicated region
      $region9: #{vector_quantizer_forward.1} parent=5 // pred_check
        _
      $region10: #{vector_quantizer_forward.1} parent=5 // pred_check_branch
        %216 = sbr.rel (%p213) target = $region12
      $region11: #{vector_quantizer_forward.1} parent=5 // pred_region
        %s217 = ssub.s32 %s16, 1
        // Predicated region
        $region13: #{vector_quantizer_forward.1} parent=11 // pred_check
          %p218 = pneg %p77
        $region14: #{vector_quantizer_forward.1} parent=11 // pred_check_branch
          %220 = sbr.rel (%p218) target = $region16
        $region15: #{vector_quantizer_forward.1} parent=11 // pred_region
          _
        $region16: #{vector_quantizer_forward.1} parent=11 // pred_fallthru
          _
        // Predicated region
        $region17: #{vector_quantizer_forward.1} parent=11 // pred_check
          %p221 = pneg %p98
        $region18: #{vector_quantizer_forward.1} parent=11 // pred_check_branch
          %223 = sbr.rel (%p221) target = $region20
        $region19: #{vector_quantizer_forward.1} parent=11 // pred_region
          _
        $region20: #{vector_quantizer_forward.1} parent=11 // pred_fallthru
          _
        // Predicated region
        $region21: #{vector_quantizer_forward.1} parent=11 // pred_check
          %p224 = pneg %p119
        $region22: #{vector_quantizer_forward.1} parent=11 // pred_check_branch
          %226 = sbr.rel (%p224) target = $region24
        $region23: #{vector_quantizer_forward.1} parent=11 // pred_region
          _
        $region24: #{vector_quantizer_forward.1} parent=11 // pred_fallthru
          _
      $region12: #{vector_quantizer_forward.1} parent=5 // pred_fallthru
        _
      %p227 = scmp.lt.s32.totalorder %s16, 2
      // Predicated region
      $region25: #{vector_quantizer_forward.1} parent=5 // pred_check
        %p228 = pneg %p227
      $region26: #{vector_quantizer_forward.1} parent=5 // pred_check_branch
        %230 = sbr.rel (%p228) target = $region28
      $region27: #{vector_quantizer_forward.1} parent=5 // pred_region
        // Predicated region
        $region29: #{vector_quantizer_forward.1} parent=27 // pred_check
          %p231 = pneg %p50
        $region30: #{vector_quantizer_forward.1} parent=27 // pred_check_branch
          %233 = sbr.rel (%p231) target = $region32
        $region31: #{vector_quantizer_forward.1} parent=27 // pred_region
          %s234 = smul.u32 2, %s24
          %p235 = scmp.lt.s32.totalorder %s23, 1
          %s236 = scalar_select %p235, %s23, 1
          %p237 = scmp.lt.s32.totalorder %s234, 1
          %s238 = scalar_select %p237, %s234, 1
          %s239 = smul.addr %s236, 2
          %s240 = sadd.s32 %s238, %s239
          %s241 = smul.addr %s240, 4
          %s242 = scalar_lea.vmem %s0, %s241
          %s243 = smul.u32 2, %s24
        $region32: #{vector_quantizer_forward.1} parent=27 // pred_fallthru
          _
      $region28: #{vector_quantizer_forward.1} parent=5 // pred_fallthru
        _
      %p244 = scmp.le.s32.totalorder 1, %s16
      %p245 = scmp.lt.s32.totalorder %s16, 3
      %p246 = pnand %p244, %p245
      %p247 = pneg %p246
      // Predicated region
      $region33: #{vector_quantizer_forward.1} parent=5 // pred_check
        _
      $region34: #{vector_quantizer_forward.1} parent=5 // pred_check_branch
        %249 = sbr.rel (%p246) target = $region36
      $region35: #{vector_quantizer_forward.1} parent=5 // pred_region
        %s250 = ssub.s32 %s16, 1
        %s251 = smul.u32 2, %s26
        %p252 = scmp.lt.s32.totalorder %s25, 1
        %s253 = scalar_select %p252, %s25, 1
        %p254 = scmp.lt.s32.totalorder %s251, 1
        %s255 = scalar_select %p254, %s251, 1
        %s256 = smul.addr %s253, 2
        %s257 = sadd.s32 %s255, %s256
        %s258 = smul.addr %s257, 4
        %s259 = scalar_lea.vmem %s0, %s258
        %p260 = pneg %p56
        %p261 = pneg %p53
        %p262 = pneg %p77
        %p263 = pneg %p74
        %p264 = pneg %p98
        %p265 = pneg %p95
        %p266 = pneg %p119
        %p267 = pneg %p116
        %p268 = pneg %p147
        %p269 = pneg %p144
        %s270 = smul.u32 2, %s26
        %p271 = scmp.lt.s32.totalorder %s25, 1
        %s272 = scalar_select %p271, %s25, 1
        %p273 = scmp.lt.s32.totalorder %s270, 1
        %s274 = scalar_select %p273, %s270, 1
        %s275 = smul.addr %s272, 2
        %s276 = sadd.s32 %s274, %s275
        %s277 = smul.addr %s276, 4
        %s278 = scalar_lea.vmem %s4, %s277
        %p279 = pneg %p175
        %p280 = pneg %p172
        %s281 = sand.u32 %s162, 1
        %s282 = scalar_lea.sflag [#allocation3], %s281
        %s283 = sand.u32 %s162, 1
        %s284 = smul.addr %s283, 2
        %s285 = scalar_lea.vmem [#allocation2], %s284
        %p286 = pneg %p203
        %p287 = pneg %p200
        %p288 = scmp.lt.s32.totalorder %s25, 1
        %s289 = scalar_select %p288, %s25, 1
        %p290 = scmp.lt.s32.totalorder %s26, 0
        %s291 = scalar_select %p290, %s26, 0
        %s292 = sadd.s32 %s291, %s289
        %s293 = scalar_lea.vmem %s6, %s292
        %s294 = smul.u32 2, %s26
        %p295 = scmp.lt.s32.totalorder %s25, 1
        %s296 = scalar_select %p295, %s25, 1
        %p297 = scmp.lt.s32.totalorder %s294, 1
        %s298 = scalar_select %p297, %s294, 1
        %s299 = smul.addr %s296, 2
        %s300 = sadd.s32 %s298, %s299
        %s301 = smul.addr %s300, 4
        %s302 = scalar_lea.vmem %s0, %s301
        %s303 = smul.u32 2, %s26
        %s304 = smul.u32 2, %s26
        %p305 = scmp.lt.s32.totalorder %s25, 1
        %s306 = scalar_select %p305, %s25, 1
        %p307 = scmp.lt.s32.totalorder %s304, 1
        %s308 = scalar_select %p307, %s304, 1
        %s309 = smul.addr %s306, 2
        %s310 = sadd.s32 %s308, %s309
        %s311 = smul.addr %s310, 4
        %s312 = scalar_lea.vmem %s4, %s311
        %s313 = smul.u32 2, %s26
        %s314 = smul.u32 2, %s26
        %p315 = scmp.lt.s32.totalorder %s25, 1
        %s316 = scalar_select %p315, %s25, 1
        %p317 = scmp.lt.s32.totalorder %s26, 0
        %s318 = scalar_select %p317, %s26, 0
        %s319 = sadd.s32 %s318, %s316
        %s320 = scalar_lea.vmem %s6, %s319
        %v321 = vld [vmem:[%s302] sm:$0xff]
        %v322 = vld [vmem:[%s1] sm:$0xff]
        %v323 = vld [vmem:[%s1 + $0x8] sm:$0xff]
        %v324 = vld [vmem:[%s1 + $0x10] sm:$0xff]
        %v325 = vld [vmem:[%s1 + $0x18] sm:$0xff]
        %v326 = vld [vmem:[%s1 + $0x20] sm:$0xff]
        %v327 = vld [vmem:[%s1 + $0x28] sm:$0xff]
        %v328 = vld [vmem:[%s1 + $0x30] sm:$0xff]
        %v329 = vld [vmem:[%s1 + $0x38] sm:$0xff]
        %v330 = vld [vmem:[%s1 + $0x40] sm:$0xff]
        %v331 = vld [vmem:[%s1 + $0x48] sm:$0xff]
        %v332 = vld [vmem:[%s1 + $0x50] sm:$0xff]
        %v333 = vld [vmem:[%s1 + $0x58] sm:$0xff]
        %v334 = vld [vmem:[%s1 + $0x60] sm:$0xff]
        %v335 = vld [vmem:[%s1 + $0x68] sm:$0xff]
        %v336 = vld [vmem:[%s1 + $0x70] sm:$0xff]
        %v337 = vld [vmem:[%s1 + $0x78] sm:$0xff]
        %v338 = vld [vmem:[%s2] sm:$0xf]
        %v339 = vld [vmem:[%s3] sm:$0xff]
        %v340 = vld [vmem:[%s3 + $0x8] sm:$0xff]
        %v341 = vld [vmem:[%s3 + $0x10] sm:$0xff]
        %v342 = vld [vmem:[%s3 + $0x18] sm:$0xff]
        %v343 = vld [vmem:[%s3 + $0x20] sm:$0xff]
        %v344 = vld [vmem:[%s3 + $0x28] sm:$0xff]
        %v345 = vld [vmem:[%s3 + $0x30] sm:$0xff]
        %v346 = vld [vmem:[%s3 + $0x38] sm:$0xff]
        %v347 = vld [vmem:[%s3 + $0x40] sm:$0xff]
        %v348 = vld [vmem:[%s3 + $0x48] sm:$0xff]
        %v349 = vld [vmem:[%s3 + $0x50] sm:$0xff]
        %v350 = vld [vmem:[%s3 + $0x58] sm:$0xff]
        %v351 = vld [vmem:[%s3 + $0x60] sm:$0xff]
        %v352 = vld [vmem:[%s3 + $0x68] sm:$0xff]
        %v353 = vld [vmem:[%s3 + $0x70] sm:$0xff]
        %v354 = vld [vmem:[%s3 + $0x78] sm:$0xff]
        %356 = vst [vmem:[#allocation1] ss:$2 sm:$0xff] %v321
        %v357 = vld.sshfl [vmem:[#allocation1] sm:$0xff pattern:$0x75316420]
        %v358 = vld.sshfl [vmem:[#allocation1 + $0x8] sm:$0xff pattern:$0x75316420]
        %vm359 = vcmask 31744
        %v361 = vsel %vm359, %v322, 0
        %v364 = vsel %vm359, %v323, 0
        %v367 = vsel %vm359, %v324, 0
        %v370 = vsel %vm359, %v325, 0
        %v373 = vsel %vm359, %v326, 0
        %v376 = vsel %vm359, %v327, 0
        %v379 = vsel %vm359, %v328, 0
        %v382 = vsel %vm359, %v329, 0
        %v385 = vsel %vm359, %v330, 0
        %v388 = vsel %vm359, %v331, 0
        %v391 = vsel %vm359, %v332, 0
        %v394 = vsel %vm359, %v333, 0
        %v397 = vsel %vm359, %v334, 0
        %v400 = vsel %vm359, %v335, 0
        %v403 = vsel %vm359, %v336, 0
        %v406 = vsel %vm359, %v337, 0
        %vm408 = vcmask 1043456
        %v409 = vsel %vm408, %v357, 0
        %v411 = vsel %vm408, %v358, 0
        %413 = vmatpush.msra.mxu0 0.0
        %414 = vmatpush.msra.mxu0 0.0
        %415 = vmatpush.msra.mxu0 0.0
        %416 = vmatpush.msra.mxu0 0.0
        %417 = vmatpush.msra.mxu0 0.0
        %418 = vmatpush.msra.mxu0 0.0
        %419 = vmatpush.msra.mxu0 0.0
        %420 = vmatpush.msra.mxu0 0.0
        %421 = vmatpush.msra.mxu0 0.0
        %422 = vmatpush.msra.mxu0 0.0
        %423 = vmatpush.msra.mxu0 0.0
        %424 = vmatpush.msra.mxu0 0.0
        %425 = vmatpush.msra.mxu0 0.0
        %426 = vmatpush.msra.mxu0 0.0
        %427 = vmatpush.msra.mxu0 0.0
        %428 = vmatpush.msra.mxu0 %v409
        %429 = vmatmul.f32.gmra.mxu0 %v361
        %v430 = vpop.f32.mrf.mxu0
        %v431 = vadd.f32 0.0, %v430
        %432 = vmatmul.f32.gmra.mxu0 %v364
        %v433 = vpop.f32.mrf.mxu0
        %v434 = vadd.f32 0.0, %v433
        %435 = vmatmul.f32.gmra.mxu0 %v367
        %v436 = vpop.f32.mrf.mxu0
        %v437 = vadd.f32 0.0, %v436
        %438 = vmatmul.f32.gmra.mxu0 %v370
        %v439 = vpop.f32.mrf.mxu0
        %v440 = vadd.f32 0.0, %v439
        %441 = vmatmul.f32.gmra.mxu0 %v373
        %v442 = vpop.f32.mrf.mxu0
        %v443 = vadd.f32 0.0, %v442
        %444 = vmatmul.f32.gmra.mxu0 %v376
        %v445 = vpop.f32.mrf.mxu0
        %v446 = vadd.f32 0.0, %v445
        %447 = vmatmul.f32.gmra.mxu0 %v379
        %v448 = vpop.f32.mrf.mxu0
        %v449 = vadd.f32 0.0, %v448
        %450 = vmatmul.f32.gmra.mxu0 %v382
        %v451 = vpop.f32.mrf.mxu0
        %v452 = vadd.f32 0.0, %v451
        %453 = vmatmul.f32.gmra.mxu0 %v385
        %v454 = vpop.f32.mrf.mxu0
        %v455 = vadd.f32 0.0, %v454
        %456 = vmatmul.f32.gmra.mxu0 %v388
        %v457 = vpop.f32.mrf.mxu0
        %v458 = vadd.f32 0.0, %v457
        %459 = vmatmul.f32.gmra.mxu0 %v391
        %v460 = vpop.f32.mrf.mxu0
        %v461 = vadd.f32 0.0, %v460
        %462 = vmatmul.f32.gmra.mxu0 %v394
        %v463 = vpop.f32.mrf.mxu0
        %v464 = vadd.f32 0.0, %v463
        %465 = vmatmul.f32.gmra.mxu0 %v397
        %v466 = vpop.f32.mrf.mxu0
        %v467 = vadd.f32 0.0, %v466
        %468 = vmatmul.f32.gmra.mxu0 %v400
        %v469 = vpop.f32.mrf.mxu0
        %v470 = vadd.f32 0.0, %v469
        %471 = vmatmul.f32.gmra.mxu0 %v403
        %v472 = vpop.f32.mrf.mxu0
        %v473 = vadd.f32 0.0, %v472
        %474 = vmatmul.f32.gmra.mxu0 %v406
        %v475 = vpop.f32.mrf.mxu0
        %v476 = vadd.f32 0.0, %v475
        %477 = vdwg.mxu0
        %478 = vmatpush.msra.mxu0 0.0
        %479 = vmatpush.msra.mxu0 0.0
        %480 = vmatpush.msra.mxu0 0.0
        %481 = vmatpush.msra.mxu0 0.0
        %482 = vmatpush.msra.mxu0 0.0
        %483 = vmatpush.msra.mxu0 0.0
        %484 = vmatpush.msra.mxu0 0.0
        %485 = vmatpush.msra.mxu0 0.0
        %486 = vmatpush.msra.mxu0 0.0
        %487 = vmatpush.msra.mxu0 0.0
        %488 = vmatpush.msra.mxu0 0.0
        %489 = vmatpush.msra.mxu0 0.0
        %490 = vmatpush.msra.mxu0 0.0
        %491 = vmatpush.msra.mxu0 0.0
        %492 = vmatpush.msra.mxu0 0.0
        %493 = vmatpush.msra.mxu0 %v411
        %494 = vmatmul.f32.gmra.mxu0 %v361
        %v495 = vpop.f32.mrf.mxu0
        %v496 = vadd.f32 0.0, %v495
        %497 = vmatmul.f32.gmra.mxu0 %v364
        %v498 = vpop.f32.mrf.mxu0
        %v499 = vadd.f32 0.0, %v498
        %500 = vmatmul.f32.gmra.mxu0 %v367
        %v501 = vpop.f32.mrf.mxu0
        %v502 = vadd.f32 0.0, %v501
        %503 = vmatmul.f32.gmra.mxu0 %v370
        %v504 = vpop.f32.mrf.mxu0
        %v505 = vadd.f32 0.0, %v504
        %506 = vmatmul.f32.gmra.mxu0 %v373
        %v507 = vpop.f32.mrf.mxu0
        %v508 = vadd.f32 0.0, %v507
        %509 = vmatmul.f32.gmra.mxu0 %v376
        %v510 = vpop.f32.mrf.mxu0
        %v511 = vadd.f32 0.0, %v510
        %512 = vmatmul.f32.gmra.mxu0 %v379
        %v513 = vpop.f32.mrf.mxu0
        %v514 = vadd.f32 0.0, %v513
        %515 = vmatmul.f32.gmra.mxu0 %v382
        %v516 = vpop.f32.mrf.mxu0
        %v517 = vadd.f32 0.0, %v516
        %518 = vmatmul.f32.gmra.mxu0 %v385
        %v519 = vpop.f32.mrf.mxu0
        %v520 = vadd.f32 0.0, %v519
        %521 = vmatmul.f32.gmra.mxu0 %v388
        %v522 = vpop.f32.mrf.mxu0
        %v523 = vadd.f32 0.0, %v522
        %524 = vmatmul.f32.gmra.mxu0 %v391
        %v525 = vpop.f32.mrf.mxu0
        %v526 = vadd.f32 0.0, %v525
        %527 = vmatmul.f32.gmra.mxu0 %v394
        %v528 = vpop.f32.mrf.mxu0
        %v529 = vadd.f32 0.0, %v528
        %530 = vmatmul.f32.gmra.mxu0 %v397
        %v531 = vpop.f32.mrf.mxu0
        %v532 = vadd.f32 0.0, %v531
        %533 = vmatmul.f32.gmra.mxu0 %v400
        %v534 = vpop.f32.mrf.mxu0
        %v535 = vadd.f32 0.0, %v534
        %536 = vmatmul.f32.gmra.mxu0 %v403
        %v537 = vpop.f32.mrf.mxu0
        %v538 = vadd.f32 0.0, %v537
        %539 = vmatmul.f32.gmra.mxu0 %v406
        %v540 = vpop.f32.mrf.mxu0
        %v541 = vadd.f32 0.0, %v540
        %542 = vdwg.mxu0
        %544 = vset.pattern.permute.xlu0 0
        %545 = vperm.xlu0 %544, %v339
        %v546 = vpop.permute.xlu0 %545
        %549 = vset.pattern.permute.xlu0 0
        %550 = vperm.xlu0 %549, %v340
        %v551 = vpop.permute.xlu0 %550
        %554 = vset.pattern.permute.xlu0 0
        %555 = vperm.xlu0 %554, %v341
        %v556 = vpop.permute.xlu0 %555
        %559 = vset.pattern.permute.xlu0 0
        %560 = vperm.xlu0 %559, %v342
        %v561 = vpop.permute.xlu0 %560
        %564 = vset.pattern.permute.xlu0 0
        %565 = vperm.xlu0 %564, %v343
        %v566 = vpop.permute.xlu0 %565
        %569 = vset.pattern.permute.xlu0 0
        %570 = vperm.xlu0 %569, %v344
        %v571 = vpop.permute.xlu0 %570
        %574 = vset.pattern.permute.xlu0 0
        %575 = vperm.xlu0 %574, %v345
        %v576 = vpop.permute.xlu0 %575
        %579 = vset.pattern.permute.xlu0 0
        %580 = vperm.xlu0 %579, %v346
        %v581 = vpop.permute.xlu0 %580
        %584 = vset.pattern.permute.xlu0 0
        %585 = vperm.xlu0 %584, %v347
        %v586 = vpop.permute.xlu0 %585
        %589 = vset.pattern.permute.xlu0 0
        %590 = vperm.xlu0 %589, %v348
        %v591 = vpop.permute.xlu0 %590
        %594 = vset.pattern.permute.xlu0 0
        %595 = vperm.xlu0 %594, %v349
        %v596 = vpop.permute.xlu0 %595
        %599 = vset.pattern.permute.xlu0 0
        %600 = vperm.xlu0 %599, %v350
        %v601 = vpop.permute.xlu0 %600
        %604 = vset.pattern.permute.xlu0 0
        %605 = vperm.xlu0 %604, %v351
        %v606 = vpop.permute.xlu0 %605
        %609 = vset.pattern.permute.xlu0 0
        %610 = vperm.xlu0 %609, %v352
        %v611 = vpop.permute.xlu0 %610
        %614 = vset.pattern.permute.xlu0 0
        %615 = vperm.xlu0 %614, %v353
        %v616 = vpop.permute.xlu0 %615
        %619 = vset.pattern.permute.xlu0 0
        %620 = vperm.xlu0 %619, %v354
        %v621 = vpop.permute.xlu0 %620
        %v623 = vsub.f32 %v431, %v546
        %v624 = vsub.f32 %v496, %v546
        %v625 = vsub.f32 %v434, %v551
        %v626 = vsub.f32 %v499, %v551
        %v627 = vsub.f32 %v437, %v556
        %v628 = vsub.f32 %v502, %v556
        %v629 = vsub.f32 %v440, %v561
        %v630 = vsub.f32 %v505, %v561
        %v631 = vsub.f32 %v443, %v566
        %v632 = vsub.f32 %v508, %v566
        %v633 = vsub.f32 %v446, %v571
        %v634 = vsub.f32 %v511, %v571
        %v635 = vsub.f32 %v449, %v576
        %v636 = vsub.f32 %v514, %v576
        %v637 = vsub.f32 %v452, %v581
        %v638 = vsub.f32 %v517, %v581
        %v639 = vsub.f32 %v455, %v586
        %v640 = vsub.f32 %v520, %v586
        %v641 = vsub.f32 %v458, %v591
        %v642 = vsub.f32 %v523, %v591
        %v643 = vsub.f32 %v461, %v596
        %v644 = vsub.f32 %v526, %v596
        %v645 = vsub.f32 %v464, %v601
        %v646 = vsub.f32 %v529, %v601
        %v647 = vsub.f32 %v467, %v606
        %v648 = vsub.f32 %v532, %v606
        %v649 = vsub.f32 %v470, %v611
        %v650 = vsub.f32 %v535, %v611
        %v651 = vsub.f32 %v473, %v616
        %v652 = vsub.f32 %v538, %v616
        %v653 = vsub.f32 %v476, %v621
        %v654 = vsub.f32 %v541, %v621
        %v655 = vmax.f32 %v623, %v627
        %v656 = vmax.f32 %v625, %v629
        %v657 = vmax.f32 %v655, %v631
        %v658 = vmax.f32 %v656, %v633
        %v659 = vmax.f32 %v657, %v635
        %v660 = vmax.f32 %v658, %v637
        %v661 = vmax.f32 %v659, %v639
        %v662 = vmax.f32 %v660, %v641
        %v663 = vmax.f32 %v661, %v643
        %v664 = vmax.f32 %v662, %v645
        %v665 = vmax.f32 %v663, %v647
        %v666 = vmax.f32 %v664, %v649
        %v667 = vmax.f32 %v665, %v651
        %v668 = vmax.f32 %v666, %v653
        %v669 = vmax.f32 %v667, %v668
        %v670 = vrot.slane %v669, 4
        %v671 = vmax.f32 %v669, %v670
        %v672 = vrot.slane %v671, 2
        %v673 = vmax.f32 %v671, %v672
        %v674 = vrot.slane %v673, 1
        %v675 = vmax.f32 %v673, %v674
        %v676 = vmax.f32 %v624, %v628
        %v677 = vmax.f32 %v626, %v630
        %v678 = vmax.f32 %v676, %v632
        %v679 = vmax.f32 %v677, %v634
        %v680 = vmax.f32 %v678, %v636
        %v681 = vmax.f32 %v679, %v638
        %v682 = vmax.f32 %v680, %v640
        %v683 = vmax.f32 %v681, %v642
        %v684 = vmax.f32 %v682, %v644
        %v685 = vmax.f32 %v683, %v646
        %v686 = vmax.f32 %v684, %v648
        %v687 = vmax.f32 %v685, %v650
        %v688 = vmax.f32 %v686, %v652
        %v689 = vmax.f32 %v687, %v654
        %v690 = vmax.f32 %v688, %v689
        %v691 = vrot.slane %v690, 4
        %v692 = vmax.f32 %v690, %v691
        %v693 = vrot.slane %v692, 2
        %v694 = vmax.f32 %v692, %v693
        %v695 = vrot.slane %v694, 1
        %v696 = vmax.f32 %v694, %v695
        %v697 = vlaneseq
        %v698 = vshrl.u32 %v697, 7
        %v699 = vadd.s32 %v698, 8
        %v700 = vadd.s32 %v698, 16
        %v701 = vadd.s32 %v698, 24
        %v702 = vadd.s32 %v698, 32
        %v703 = vadd.s32 %v698, 40
        %v704 = vadd.s32 %v698, 48
        %v705 = vadd.s32 %v698, 56
        %v706 = vadd.s32 %v698, 64
        %v707 = vadd.s32 %v698, 72
        %v708 = vadd.s32 %v698, 80
        %v709 = vadd.s32 %v698, 88
        %v710 = vadd.s32 %v698, 96
        %v711 = vadd.s32 %v698, 104
        %v712 = vadd.s32 %v698, 112
        %v713 = vadd.s32 %v698, 120
        %vm714 = vcmp.eq.f32.partialorder %v623, %v675
        %vm715 = vcmp.eq.f32.partialorder %v624, %v696
        %vm716 = vcmp.eq.f32.partialorder %v625, %v675
        %vm717 = vcmp.eq.f32.partialorder %v626, %v696
        %vm718 = vcmp.eq.f32.partialorder %v627, %v675
        %vm719 = vcmp.eq.f32.partialorder %v628, %v696
        %vm720 = vcmp.eq.f32.partialorder %v629, %v675
        %vm721 = vcmp.eq.f32.partialorder %v630, %v696
        %vm722 = vcmp.eq.f32.partialorder %v631, %v675
        %vm723 = vcmp.eq.f32.partialorder %v632, %v696
        %vm724 = vcmp.eq.f32.partialorder %v633, %v675
        %vm725 = vcmp.eq.f32.partialorder %v634, %v696
        %vm726 = vcmp.eq.f32.partialorder %v635, %v675
        %vm727 = vcmp.eq.f32.partialorder %v636, %v696
        %vm728 = vcmp.eq.f32.partialorder %v637, %v675
        %vm729 = vcmp.eq.f32.partialorder %v638, %v696
        %vm730 = vcmp.eq.f32.partialorder %v639, %v675
        %vm731 = vcmp.eq.f32.partialorder %v640, %v696
        %vm732 = vcmp.eq.f32.partialorder %v641, %v675
        %vm733 = vcmp.eq.f32.partialorder %v642, %v696
        %vm734 = vcmp.eq.f32.partialorder %v643, %v675
        %vm735 = vcmp.eq.f32.partialorder %v644, %v696
        %vm736 = vcmp.eq.f32.partialorder %v645, %v675
        %vm737 = vcmp.eq.f32.partialorder %v646, %v696
        %vm738 = vcmp.eq.f32.partialorder %v647, %v675
        %vm739 = vcmp.eq.f32.partialorder %v648, %v696
        %vm740 = vcmp.eq.f32.partialorder %v649, %v675
        %vm741 = vcmp.eq.f32.partialorder %v650, %v696
        %vm742 = vcmp.eq.f32.partialorder %v651, %v675
        %vm743 = vcmp.eq.f32.partialorder %v652, %v696
        %vm744 = vcmp.eq.f32.partialorder %v653, %v675
        %vm745 = vcmp.eq.f32.partialorder %v654, %v696
        %v746 = vsel %vm714, %v698, 128
        %v747 = vsel %vm715, %v698, 128
        %v748 = vsel %vm716, %v699, 128
        %v749 = vsel %vm717, %v699, 128
        %v750 = vsel %vm718, %v700, 128
        %v751 = vsel %vm719, %v700, 128
        %v752 = vsel %vm720, %v701, 128
        %v753 = vsel %vm721, %v701, 128
        %v754 = vsel %vm722, %v702, 128
        %v755 = vsel %vm723, %v702, 128
        %v756 = vsel %vm724, %v703, 128
        %v757 = vsel %vm725, %v703, 128
        %v758 = vsel %vm726, %v704, 128
        %v759 = vsel %vm727, %v704, 128
        %v760 = vsel %vm728, %v705, 128
        %v761 = vsel %vm729, %v705, 128
        %v762 = vsel %vm730, %v706, 128
        %v763 = vsel %vm731, %v706, 128
        %v764 = vsel %vm732, %v707, 128
        %v765 = vsel %vm733, %v707, 128
        %v766 = vsel %vm734, %v708, 128
        %v767 = vsel %vm735, %v708, 128
        %v768 = vsel %vm736, %v709, 128
        %v769 = vsel %vm737, %v709, 128
        %v770 = vsel %vm738, %v710, 128
        %v771 = vsel %vm739, %v710, 128
        %v772 = vsel %vm740, %v711, 128
        %v773 = vsel %vm741, %v711, 128
        %v774 = vsel %vm742, %v712, 128
        %v775 = vsel %vm743, %v712, 128
        %v776 = vsel %vm744, %v713, 128
        %v777 = vsel %vm745, %v713, 128
        %vm778 = vcmp.lt.s32.totalorder %v746, %v750
        %v779 = vsel %vm778, %v746, %v750
        %vm780 = vcmp.lt.s32.totalorder %v748, %v752
        %v781 = vsel %vm780, %v748, %v752
        %vm782 = vcmp.lt.s32.totalorder %v779, %v754
        %v783 = vsel %vm782, %v779, %v754
        %vm784 = vcmp.lt.s32.totalorder %v781, %v756
        %v785 = vsel %vm784, %v781, %v756
        %vm786 = vcmp.lt.s32.totalorder %v783, %v758
        %v787 = vsel %vm786, %v783, %v758
        %vm788 = vcmp.lt.s32.totalorder %v785, %v760
        %v789 = vsel %vm788, %v785, %v760
        %vm790 = vcmp.lt.s32.totalorder %v787, %v762
        %v791 = vsel %vm790, %v787, %v762
        %vm792 = vcmp.lt.s32.totalorder %v789, %v764
        %v793 = vsel %vm792, %v789, %v764
        %vm794 = vcmp.lt.s32.totalorder %v791, %v766
        %v795 = vsel %vm794, %v791, %v766
        %vm796 = vcmp.lt.s32.totalorder %v793, %v768
        %v797 = vsel %vm796, %v793, %v768
        %vm798 = vcmp.lt.s32.totalorder %v795, %v770
        %v799 = vsel %vm798, %v795, %v770
        %vm800 = vcmp.lt.s32.totalorder %v797, %v772
        %v801 = vsel %vm800, %v797, %v772
        %vm802 = vcmp.lt.s32.totalorder %v799, %v774
        %v803 = vsel %vm802, %v799, %v774
        %vm804 = vcmp.lt.s32.totalorder %v801, %v776
        %v805 = vsel %vm804, %v801, %v776
        %vm806 = vcmp.lt.s32.totalorder %v803, %v805
        %v807 = vsel %vm806, %v803, %v805
        %v808 = vrot.slane %v807, 4
        %vm809 = vcmp.lt.s32.totalorder %v807, %v808
        %v810 = vsel %vm809, %v807, %v808
        %v811 = vrot.slane %v810, 2
        %vm812 = vcmp.lt.s32.totalorder %v810, %v811
        %v813 = vsel %vm812, %v810, %v811
        %v814 = vrot.slane %v813, 1
        %vm815 = vcmp.lt.s32.totalorder %v813, %v814
        %v816 = vsel %vm815, %v813, %v814
        %vm817 = vcmp.lt.s32.totalorder %v747, %v751
        %v818 = vsel %vm817, %v747, %v751
        %vm819 = vcmp.lt.s32.totalorder %v749, %v753
        %v820 = vsel %vm819, %v749, %v753
        %vm821 = vcmp.lt.s32.totalorder %v818, %v755
        %v822 = vsel %vm821, %v818, %v755
        %vm823 = vcmp.lt.s32.totalorder %v820, %v757
        %v824 = vsel %vm823, %v820, %v757
        %vm825 = vcmp.lt.s32.totalorder %v822, %v759
        %v826 = vsel %vm825, %v822, %v759
        %vm827 = vcmp.lt.s32.totalorder %v824, %v761
        %v828 = vsel %vm827, %v824, %v761
        %vm829 = vcmp.lt.s32.totalorder %v826, %v763
        %v830 = vsel %vm829, %v826, %v763
        %vm831 = vcmp.lt.s32.totalorder %v828, %v765
        %v832 = vsel %vm831, %v828, %v765
        %vm833 = vcmp.lt.s32.totalorder %v830, %v767
        %v834 = vsel %vm833, %v830, %v767
        %vm835 = vcmp.lt.s32.totalorder %v832, %v769
        %v836 = vsel %vm835, %v832, %v769
        %vm837 = vcmp.lt.s32.totalorder %v834, %v771
        %v838 = vsel %vm837, %v834, %v771
        %vm839 = vcmp.lt.s32.totalorder %v836, %v773
        %v840 = vsel %vm839, %v836, %v773
        %vm841 = vcmp.lt.s32.totalorder %v838, %v775
        %v842 = vsel %vm841, %v838, %v775
        %vm843 = vcmp.lt.s32.totalorder %v840, %v777
        %v844 = vsel %vm843, %v840, %v777
        %vm845 = vcmp.lt.s32.totalorder %v842, %v844
        %v846 = vsel %vm845, %v842, %v844
        %v847 = vrot.slane %v846, 4
        %vm848 = vcmp.lt.s32.totalorder %v846, %v847
        %v849 = vsel %vm848, %v846, %v847
        %v850 = vrot.slane %v849, 2
        %vm851 = vcmp.lt.s32.totalorder %v849, %v850
        %v852 = vsel %vm851, %v849, %v850
        %v853 = vrot.slane %v852, 1
        %vm854 = vcmp.lt.s32.totalorder %v852, %v853
        %v855 = vsel %vm854, %v852, %v853
        %vm856 = vcmp.eq.s32.totalorder %v746, %v816
        %vm857 = vcmp.eq.s32.totalorder %v747, %v855
        %vm858 = vcmp.eq.s32.totalorder %v748, %v816
        %vm859 = vcmp.eq.s32.totalorder %v749, %v855
        %vm860 = vcmp.eq.s32.totalorder %v750, %v816
        %vm861 = vcmp.eq.s32.totalorder %v751, %v855
        %vm862 = vcmp.eq.s32.totalorder %v752, %v816
        %vm863 = vcmp.eq.s32.totalorder %v753, %v855
        %vm864 = vcmp.eq.s32.totalorder %v754, %v816
        %vm865 = vcmp.eq.s32.totalorder %v755, %v855
        %vm866 = vcmp.eq.s32.totalorder %v756, %v816
        %vm867 = vcmp.eq.s32.totalorder %v757, %v855
        %vm868 = vcmp.eq.s32.totalorder %v758, %v816
        %vm869 = vcmp.eq.s32.totalorder %v759, %v855
        %vm870 = vcmp.eq.s32.totalorder %v760, %v816
        %vm871 = vcmp.eq.s32.totalorder %v761, %v855
        %vm872 = vcmp.eq.s32.totalorder %v762, %v816
        %vm873 = vcmp.eq.s32.totalorder %v763, %v855
        %vm874 = vcmp.eq.s32.totalorder %v764, %v816
        %vm875 = vcmp.eq.s32.totalorder %v765, %v855
        %vm876 = vcmp.eq.s32.totalorder %v766, %v816
        %vm877 = vcmp.eq.s32.totalorder %v767, %v855
        %vm878 = vcmp.eq.s32.totalorder %v768, %v816
        %vm879 = vcmp.eq.s32.totalorder %v769, %v855
        %vm880 = vcmp.eq.s32.totalorder %v770, %v816
        %vm881 = vcmp.eq.s32.totalorder %v771, %v855
        %vm882 = vcmp.eq.s32.totalorder %v772, %v816
        %vm883 = vcmp.eq.s32.totalorder %v773, %v855
        %vm884 = vcmp.eq.s32.totalorder %v774, %v816
        %vm885 = vcmp.eq.s32.totalorder %v775, %v855
        %vm886 = vcmp.eq.s32.totalorder %v776, %v816
        %vm887 = vcmp.eq.s32.totalorder %v777, %v855
        %v888 = vsel %vm856, 1, 0
        %v889 = vsel %vm857, 1, 0
        %v890 = vsel %vm858, 1, 0
        %v891 = vsel %vm859, 1, 0
        %v892 = vsel %vm860, 1, 0
        %v893 = vsel %vm861, 1, 0
        %v894 = vsel %vm862, 1, 0
        %v895 = vsel %vm863, 1, 0
        %v896 = vsel %vm864, 1, 0
        %v897 = vsel %vm865, 1, 0
        %v898 = vsel %vm866, 1, 0
        %v899 = vsel %vm867, 1, 0
        %v900 = vsel %vm868, 1, 0
        %v901 = vsel %vm869, 1, 0
        %v902 = vsel %vm870, 1, 0
        %v903 = vsel %vm871, 1, 0
        %v904 = vsel %vm872, 1, 0
        %v905 = vsel %vm873, 1, 0
        %v906 = vsel %vm874, 1, 0
        %v907 = vsel %vm875, 1, 0
        %v908 = vsel %vm876, 1, 0
        %v909 = vsel %vm877, 1, 0
        %v910 = vsel %vm878, 1, 0
        %v911 = vsel %vm879, 1, 0
        %v912 = vsel %vm880, 1, 0
        %v913 = vsel %vm881, 1, 0
        %v914 = vsel %vm882, 1, 0
        %v915 = vsel %vm883, 1, 0
        %v916 = vsel %vm884, 1, 0
        %v917 = vsel %vm885, 1, 0
        %v918 = vsel %vm886, 1, 0
        %v919 = vsel %vm887, 1, 0
        %v920 = vcvt.s32.f32 %v888
        %v921 = vcvt.s32.f32 %v889
        %v922 = vcvt.s32.f32 %v890
        %v923 = vcvt.s32.f32 %v891
        %v924 = vcvt.s32.f32 %v892
        %v925 = vcvt.s32.f32 %v893
        %v926 = vcvt.s32.f32 %v894
        %v927 = vcvt.s32.f32 %v895
        %v928 = vcvt.s32.f32 %v896
        %v929 = vcvt.s32.f32 %v897
        %v930 = vcvt.s32.f32 %v898
        %v931 = vcvt.s32.f32 %v899
        %v932 = vcvt.s32.f32 %v900
        %v933 = vcvt.s32.f32 %v901
        %v934 = vcvt.s32.f32 %v902
        %v935 = vcvt.s32.f32 %v903
        %v936 = vcvt.s32.f32 %v904
        %v937 = vcvt.s32.f32 %v905
        %v938 = vcvt.s32.f32 %v906
        %v939 = vcvt.s32.f32 %v907
        %v940 = vcvt.s32.f32 %v908
        %v941 = vcvt.s32.f32 %v909
        %v942 = vcvt.s32.f32 %v910
        %v943 = vcvt.s32.f32 %v911
        %v944 = vcvt.s32.f32 %v912
        %v945 = vcvt.s32.f32 %v913
        %v946 = vcvt.s32.f32 %v914
        %v947 = vcvt.s32.f32 %v915
        %v948 = vcvt.s32.f32 %v916
        %v949 = vcvt.s32.f32 %v917
        %v950 = vcvt.s32.f32 %v918
        %v951 = vcvt.s32.f32 %v919
        %952 = vmatpush.msra.mxu0 %v950
        %953 = vmatpush.msra.mxu0 %v948
        %954 = vmatpush.msra.mxu0 %v946
        %955 = vmatpush.msra.mxu0 %v944
        %956 = vmatpush.msra.mxu0 %v942
        %957 = vmatpush.msra.mxu0 %v940
        %958 = vmatpush.msra.mxu0 %v938
        %959 = vmatpush.msra.mxu0 %v936
        %960 = vmatpush.msra.mxu0 %v934
        %961 = vmatpush.msra.mxu0 %v932
        %962 = vmatpush.msra.mxu0 %v930
        %963 = vmatpush.msra.mxu0 %v928
        %964 = vmatpush.msra.mxu0 %v926
        %965 = vmatpush.msra.mxu0 %v924
        %966 = vmatpush.msra.mxu0 %v922
        %967 = vmatpush.msra.mxu0 %v920
        %968 = vmatmul.f32.gmra.mxu0 %v338
        %v969 = vpop.f32.mrf.mxu0
        %v970 = vadd.f32 0.0, %v969
        %971 = vdwg.mxu0
        %972 = vmatpush.msra.mxu0 %v951
        %973 = vmatpush.msra.mxu0 %v949
        %974 = vmatpush.msra.mxu0 %v947
        %975 = vmatpush.msra.mxu0 %v945
        %976 = vmatpush.msra.mxu0 %v943
        %977 = vmatpush.msra.mxu0 %v941
        %978 = vmatpush.msra.mxu0 %v939
        %979 = vmatpush.msra.mxu0 %v937
        %980 = vmatpush.msra.mxu0 %v935
        %981 = vmatpush.msra.mxu0 %v933
        %982 = vmatpush.msra.mxu0 %v931
        %983 = vmatpush.msra.mxu0 %v929
        %984 = vmatpush.msra.mxu0 %v927
        %985 = vmatpush.msra.mxu0 %v925
        %986 = vmatpush.msra.mxu0 %v923
        %987 = vmatpush.msra.mxu0 %v921
        %988 = vmatmul.f32.gmra.mxu0 %v338
        %v989 = vpop.f32.mrf.mxu0
        %v990 = vadd.f32 0.0, %v989
        %991 = vdwg.mxu0
        %v994 = vrot.slane %v990, 4
        %v995 = vsel %vm408, %v970, %v994
        %997 = vst [vmem:[%s312] sm:$0xff] %v995
        %v998 = vrot.slane %v855, 7
        %vm999 = vcmask 1040384
        %v1000 = vsel %vm999, %v816, %v998
        %v1001 = vlaneseq
        %vm1002 = vcmp.ge.s32.totalorder %v1001, 0
        %vm1003 = vcmp.lt.s32.totalorder %v1001, 256
        %vm1004 = vmand %vm1002, %vm1003
        %1005 = vst.msk [vmem:[%s285] sm:$0x3] %vm1004, %v1000
        %1006 = vst [vmem:[#allocation1] ss:$2 sm:$0xff] %v321
        %v1007 = vld.sshfl [vmem:[#allocation1] sm:$0xff pattern:$0x75316420]
        %v1008 = vld.sshfl [vmem:[#allocation1 + $0x8] sm:$0xff pattern:$0x75316420]
        %v1011 = vsub.f32 %v970, %v1007
        %v1012 = vsub.f32 %v990, %v1008
        %v1013 = vmul.f32 %v1011, %v1011
        %v1014 = vmul.f32 %v1012, %v1012
        %v1015 = vsel %vm408, %v1013, 0.0
        %v1016 = vrot.slane %v1015, 4
        %v1017 = vadd.f32 %v1015, %v1016
        %v1018 = vrot.slane %v1017, 2
        %v1019 = vadd.f32 %v1017, %v1018
        %v1020 = vrot.slane %v1019, 1
        %v1021 = vadd.f32 %v1019, %v1020
        %v1022 = vsel %vm408, %v1014, 0.0
        %v1023 = vrot.slane %v1022, 4
        %v1024 = vadd.f32 %v1022, %v1023
        %v1025 = vrot.slane %v1024, 2
        %v1026 = vadd.f32 %v1024, %v1025
        %v1027 = vrot.slane %v1026, 1
        %v1028 = vadd.f32 %v1026, %v1027
        %v1029 = vsel %vm999, %v1021, 0.0
        %v1030 = vsel %vm999, %v1028, 0.0
        %v1031 = vadd.f32 %v1029, %v1030
        %1032 = vadd.xlane.f32.xlu0 %v1031
        %v1033 = vpop.xlane.xlu0 %1032
        %v1034 = vrot.slane %v1033, 4
        %v1035 = vadd.f32 %v1033, %v1034
        %v1036 = vrot.slane %v1035, 2
        %v1037 = vadd.f32 %v1035, %v1036
        %v1038 = vrot.slane %v1037, 1
        %v1039 = vadd.f32 %v1037, %v1038
        %s1040 = vtos %v1039
        %v1041 = vstv %s1040
        %v1042 = vadd.f32 %v1041, 0.0
        %vm1043 = vcmask 0
        %1044 = vst.msk [vmem:[%s320] sm:$0x1] %vm1043, %v1042
        %s1045 = smul.u32 2, %s26
        %p1046 = scmp.lt.s32.totalorder %s25, 1
        %s1047 = scalar_select %p1046, %s25, 1
        %p1048 = scmp.lt.s32.totalorder %s1045, 1
        %s1049 = scalar_select %p1048, %s1045, 1
        %s1050 = smul.addr %s1047, 2
        %s1051 = sadd.s32 %s1049, %s1050
        %s1052 = smul.addr %s1051, 4
        %s1053 = scalar_lea.vmem %s4, %s1052
        %s1054 = sand.u32 %s162, 1
        %s1055 = scalar_lea.sflag [#allocation3], %s1054
        %s1056 = sand.u32 %s162, 1
        %s1057 = smul.addr %s1056, 2
        %s1058 = scalar_lea.vmem [#allocation2], %s1057
        %p1059 = scmp.lt.s32.totalorder %s25, 1
        %s1060 = scalar_select %p1059, %s25, 1
        %p1061 = scmp.lt.s32.totalorder %s26, 0
        %s1062 = scalar_select %p1061, %s26, 0
        %s1063 = sadd.s32 %s1062, %s1060
        %s1064 = scalar_lea.vmem %s6, %s1063
        // Predicated region
        $region37: #{vector_quantizer_forward.1} parent=35 // pred_check
          %p1065 = pneg %p144
        $region38: #{vector_quantizer_forward.1} parent=35 // pred_check_branch
          %1067 = sbr.rel (%p1065) target = $region40
        $region39: #{vector_quantizer_forward.1} parent=35 // pred_region
          %s1068 = smul.u32 2, %s26
        $region40: #{vector_quantizer_forward.1} parent=35 // pred_fallthru
          _
        // Predicated region
        $region41: #{vector_quantizer_forward.1} parent=35 // pred_check
          %p1069 = pneg %p172
        $region42: #{vector_quantizer_forward.1} parent=35 // pred_check_branch
          %1071 = sbr.rel (%p1069) target = $region44
        $region43: #{vector_quantizer_forward.1} parent=35 // pred_region
          %s1072 = smul.u32 2, %s26
          %1074 = vsyncadd %s1055, 0
          %s1075 = smul.addr %s25, 2
          %s1076 = sadd.s32 %s1072, %s1075
          %s1077 = scalar_lea.hbm %s5, %s1076
          %s1079 = sshll.u32 %s1058, 4
          %s1080 = int_to_ptr.vmem [resolvable:$true] %s1079
          %s1081 = sshll.u32 %s1077, 4
          %s1082 = int_to_ptr.hbm [resolvable:$true] %s1081
          %1084 = dma.vmem_to_hbm [thread:$0]  %s1080, 32, %s1082, %s1055
        $region44: #{vector_quantizer_forward.1} parent=35 // pred_fallthru
          _
        // Predicated region
        $region45: #{vector_quantizer_forward.1} parent=35 // pred_check
          %p1085 = pneg %p200
        $region46: #{vector_quantizer_forward.1} parent=35 // pred_check_branch
          %1087 = sbr.rel (%p1085) target = $region48
        $region47: #{vector_quantizer_forward.1} parent=35 // pred_region
          _
        $region48: #{vector_quantizer_forward.1} parent=35 // pred_fallthru
          _
      $region36: #{vector_quantizer_forward.1} parent=5 // pred_fallthru
        _
      %p1088 = scmp.le.s32.totalorder 2, %s16
      // Predicated region
      $region49: #{vector_quantizer_forward.1} parent=5 // pred_check
        %p1089 = pneg %p1088
      $region50: #{vector_quantizer_forward.1} parent=5 // pred_check_branch
        %1091 = sbr.rel (%p1089) target = $region52
      $region51: #{vector_quantizer_forward.1} parent=5 // pred_region
        %s1092 = ssub.s32 %s16, 2
        // Predicated region
        $region53: #{vector_quantizer_forward.1} parent=51 // pred_check
          %p1093 = pneg %p150
        $region54: #{vector_quantizer_forward.1} parent=51 // pred_check_branch
          %1095 = sbr.rel (%p1093) target = $region56
        $region55: #{vector_quantizer_forward.1} parent=51 // pred_region
          %s1096 = smul.u32 2, %s28
          %p1097 = scmp.lt.s32.totalorder %s27, 1
          %s1098 = scalar_select %p1097, %s27, 1
          %p1099 = scmp.lt.s32.totalorder %s1096, 1
          %s1100 = scalar_select %p1099, %s1096, 1
          %s1101 = smul.addr %s1098, 2
          %s1102 = sadd.s32 %s1100, %s1101
          %s1103 = smul.addr %s1102, 4
          %s1104 = scalar_lea.vmem %s4, %s1103
        $region56: #{vector_quantizer_forward.1} parent=51 // pred_fallthru
          _
        // Predicated region
        $region57: #{vector_quantizer_forward.1} parent=51 // pred_check
          %p1105 = pneg %p178
        $region58: #{vector_quantizer_forward.1} parent=51 // pred_check_branch
          %1107 = sbr.rel (%p1105) target = $region60
        $region59: #{vector_quantizer_forward.1} parent=51 // pred_region
          %s1108 = sand.u32 %s163, 1
          %s1109 = scalar_lea.sflag [#allocation3], %s1108
          %s1110 = sand.u32 %s163, 1
          %s1111 = smul.addr %s1110, 2
          %s1112 = scalar_lea.vmem [#allocation2], %s1111
          %1114 = dma.done %s1109, 32
        $region60: #{vector_quantizer_forward.1} parent=51 // pred_fallthru
          _
        // Predicated region
        $region61: #{vector_quantizer_forward.1} parent=51 // pred_check
          %p1115 = pneg %p206
        $region62: #{vector_quantizer_forward.1} parent=51 // pred_check_branch
          %1117 = sbr.rel (%p1115) target = $region64
        $region63: #{vector_quantizer_forward.1} parent=51 // pred_region
          %p1118 = scmp.lt.s32.totalorder %s27, 1
          %s1119 = scalar_select %p1118, %s27, 1
          %p1120 = scmp.lt.s32.totalorder %s28, 0
          %s1121 = scalar_select %p1120, %s28, 0
          %s1122 = sadd.s32 %s1121, %s1119
          %s1123 = scalar_lea.vmem %s6, %s1122
        $region64: #{vector_quantizer_forward.1} parent=51 // pred_fallthru
          _
      $region52: #{vector_quantizer_forward.1} parent=5 // pred_fallthru
        _
    $region6: #{vector_quantizer_forward.1} parent=1 // loop_footer
      %s20 = sadd.s32 1, %s16
    $region7: #{vector_quantizer_forward.1} parent=1 // loop_footer_branch
      %15 = sbr.rel target = $region3
    $region8: #{vector_quantizer_forward.1} parent=1 // loop_exit
      _
    %1124 = vsyncpa [#allocation3], 1
    %s1125 = scalar_lea.sflag [#allocation3], 1
    %1126 = vsyncpa %s1125, 1

</llo_original>
